<compile_context>
chip_gen: v7x
topology: tpu7x:2x2x1
jax: 0.10.0
libtpu: 0.0.40
codegen_flags: <defaults>
</compile_context>

<pallas_src>
import jax
import jax.numpy as jnp
from jax import lax
from jax.experimental import pallas as pl
from jax.experimental.pallas import tpu as pltpu

_NEG_INF = float("-inf")
_LANES = 128


def _vmem_capacity_bytes():
    """Physical VMEM capacity (falls back to the v5e/v6e 128 MiB if unknown)."""
    try:
        cap = getattr(pltpu.get_tpu_info(), "vmem_capacity_bytes", None)
        if cap:
            return int(cap)
    except Exception:
        pass
    return 128 * 1024 * 1024


def _make_kernel(S, TS, C):
    """Builds the kernel closed over the static sizes S (true spatial size),
    TS (spatial tile), C (channels)."""
    NS = pl.cdiv(S, TS)
    needs_mask = (S % TS) != 0
    chunked = (TS % _LANES) == 0          # lane-dense chunked accumulation path
    if not chunked and NS != 1:
        raise ValueError("multi-tile grids require a 128-aligned spatial tile")
    inv_s = 1.0 / float(S)

    if chunked:
        nck = TS // _LANES                                    # 128-lane chunks per tile
        unroll = next(u for u in (8, 4, 2, 1) if nck % u == 0)  # chunks per loop iter
        ngroups = nck // unroll
    else:
        nck = unroll = ngroups = None

    def kernel(x_ref, w1_ref, w2_ref, o_ref, sum_ref, max_ref):
        # x_ref : (1, C, TS) spatial tile of one batch element (native dtype)
        # w1_ref: (Cr, C)    fc1 weight (Conv3d C -> C//ratio, squeezed)
        # w2_ref: (C, Cr)    fc2 weight (Conv3d C//ratio -> C, squeezed)
        # o_ref : (1, C, 1)  per-channel attention weights
        # sum_ref / max_ref : (C, 128) f32 lane-dense running accumulators
        s = pl.program_id(1)
        n_s = pl.num_programs(1)

        @pl.when(s == 0)
        def _init():
            sum_ref[...] = jnp.zeros_like(sum_ref)
            max_ref[...] = jnp.full_like(max_ref, _NEG_INF)

        if chunked:
            def accumulate(masked):
                # Per-tile pass: fold aligned 128-lane chunks into the (C,128)
                # accumulators with pure VPU add/max.  `masked` is a static
                # Python bool; the mask is only traced for the last tile.
                if masked:
                    rem = S - s * TS  # valid lanes remaining in this tile
                    lane = lax.broadcasted_iota(jnp.int32, (C, _LANES), 1)

                def group(g, carry):
                    ps = jnp.zeros((C, _LANES), jnp.float32)
                    pm = jnp.full((C, _LANES), _NEG_INF, jnp.float32)
                    for u in range(unroll):                       # static unroll
                        j = g * unroll + u
                        off = pl.multiple_of(j * _LANES, _LANES)
                        ck = x_ref[0, :, pl.ds(off, _LANES)].astype(jnp.float32)
                        if masked:
                            valid = lane < (rem - j * _LANES)
                            ck_s = jnp.where(valid, ck, 0.0)
                            ck_m = jnp.where(valid, ck, _NEG_INF)
                        else:
                            ck_s = ck
                            ck_m = ck
                        ps = ps + ck_s
                        pm = jnp.maximum(pm, ck_m)
                    sum_ref[...] = sum_ref[...] + ps
                    max_ref[...] = jnp.maximum(max_ref[...], pm)
                    return carry

                lax.fori_loop(0, ngroups, group, 0)

            if needs_mask:
                # Only the last tile pays for the masking VALU work.
                @pl.when(s < n_s - 1)
                def _full_tiles():
                    accumulate(False)

                @pl.when(s == n_s - 1)
                def _ragged_tile():
                    accumulate(True)
            else:
                accumulate(False)
        else:
            # Single full-extent tile (TS == S, not 128-aligned): whole-tile
            # reduce, result placed in lane 0 of the lane-dense accumulators.
            x = x_ref[0]                                               # (C, S)
            p_sum = jnp.sum(x, axis=-1, keepdims=True, dtype=jnp.float32)
            p_max = jnp.max(x, axis=-1, keepdims=True).astype(jnp.float32)
            sum_ref[:, 0:1] = p_sum
            max_ref[:, 0:1] = p_max

        @pl.when(s == n_s - 1)
        def _finalize():
            # Single cross-lane (XLU) reduce of the lane-dense accumulators.
            tot_sum = jnp.sum(sum_ref[...], axis=-1, keepdims=True)    # (C, 1)
            tot_max = jnp.max(max_ref[...], axis=-1, keepdims=True)    # (C, 1)
            avg = tot_sum * jnp.float32(inv_s)                         # true mean
            # Stack [avg | max] into one (C, 2) RHS -> each matmul issued once.
            col = lax.broadcasted_iota(jnp.int32, (C, 2), 1)
            pooled = jnp.where(col == 0, avg, tot_max)                 # (C, 2)

            w1 = w1_ref[...].astype(jnp.float32)                       # (Cr, C)
            w2 = w2_ref[...].astype(jnp.float32)                       # (C, Cr)
            h = jnp.maximum(
                jnp.dot(w1, pooled, preferred_element_type=jnp.float32), 0.0)  # (Cr, 2)
            out2 = jnp.dot(w2, h, preferred_element_type=jnp.float32)          # (C, 2)
            att = jax.nn.sigmoid(jnp.sum(out2, axis=1, keepdims=True))         # (C, 1)
            o_ref[0] = att.astype(o_ref.dtype)

    return kernel


def _choose_tile_s(S, C, itemsize):
    """Pick a spatial tile: VMEM-capacity-aware per-buffer budget (~16 MiB on
    128 MiB-VMEM chips, ~12.8 MiB on 64 MiB v7x), rounded to 128 lanes and
    balanced against S so the last tile is not nearly empty."""
    vmem_cap = _vmem_capacity_bytes()
    budget = min(16 * 1024 * 1024, max(2 * 1024 * 1024, vmem_cap // 5))
    lanes = budget // max(1, C * itemsize)
    lanes = max(_LANES, (lanes // _LANES) * _LANES)
    if S <= lanes:
        return S  # full-extent block is always a legal BlockSpec
    n_tiles = pl.cdiv(S, lanes)
    per_tile = pl.cdiv(S, n_tiles)
    return _LANES * pl.cdiv(per_tile, _LANES)


def channel_attention_3d(x, w1, w2, *, tile_s=None):
    """x: (N, C, D, H, W); w1: (C_r, C); w2: (C, C_r) -> (N, C, 1, 1, 1)."""
    N, C, D, H, W = x.shape
    S = D * H * W
    Cr = w1.shape[0]
    itemsize = x.dtype.itemsize
    x_flat = x.reshape(N, C, S)

    if tile_s is None:
        TS = _choose_tile_s(S, C, itemsize)
    else:
        TS = min(int(tile_s), S)
        if TS < S:
            TS = max(_LANES, (TS // _LANES) * _LANES)
    NS = pl.cdiv(S, TS)

    kernel = _make_kernel(S, TS, C)

    # Explicit scoped-VMEM limit: 2x double-buffered input tile + headroom.
    tile_bytes = C * TS * itemsize
    vmem_cap = _vmem_capacity_bytes()
    vmem_limit = int(min(int(0.75 * vmem_cap),
                         max(32 * 1024 * 1024, 3 * tile_bytes + (4 << 20))))

    cost = pl.CostEstimate(
        flops=2 * N * C * S + 4 * N * (Cr * C + C * Cr),
        transcendentals=N * C,
        bytes_accessed=(N * C * S * itemsize
                        + 2 * Cr * C * w1.dtype.itemsize
                        + N * C * itemsize),
    )

    out = pl.pallas_call(
        kernel,
        out_shape=jax.ShapeDtypeStruct((N, C, 1), x.dtype),
        grid_spec=pltpu.PrefetchScalarGridSpec(
            num_scalar_prefetch=0,
            grid=(N, NS),
            in_specs=[
                pl.BlockSpec((1, C, TS), lambda n, s: (n, 0, s)),
                pl.BlockSpec((Cr, C), lambda n, s: (0, 0)),   # VMEM-resident
                pl.BlockSpec((C, Cr), lambda n, s: (0, 0)),   # VMEM-resident
            ],
            out_specs=pl.BlockSpec((1, C, 1), lambda n, s: (n, 0, 0)),
            scratch_shapes=[
                pltpu.VMEM((C, _LANES), jnp.float32),  # lane-dense running sum
                pltpu.VMEM((C, _LANES), jnp.float32),  # lane-dense running max
            ],
        ),
        compiler_params=pltpu.CompilerParams(
            dimension_semantics=("parallel", "arbitrary"),
            vmem_limit_bytes=vmem_limit),
        cost_estimate=cost,
    )(x_flat, w1, w2)

    return out.reshape(N, C, 1, 1, 1)


def _reference(x, w1, w2):
    # Pure-JAX reference mirroring the PyTorch forward.
    avg = jnp.mean(x, axis=(2, 3, 4))                       # (N, C)
    mx = jnp.max(x, axis=(2, 3, 4))                         # (N, C)

    def mlp(p):  # p: (N, C)
        h = jnp.maximum(p @ w1.T, 0.0)                      # (N, C_r)
        return h @ w2.T                                     # (N, C)

    out = jax.nn.sigmoid(mlp(avg) + mlp(mx))
    return out.reshape(x.shape[0], x.shape[1], 1, 1, 1)


if __name__ == "__main__":
    master_key = jax.random.PRNGKey(0)

    def run_case(N, C, ratio, D, H, W, tile_s, key):
        Cr = max(1, C // ratio)
        kx, k1, k2 = jax.random.split(key, 3)
        x = jax.random.normal(kx, (N, C, D, H, W), dtype=jnp.float32)
        # Deterministic synthetic weights (Conv3d 1x1x1 weights squeezed to 2D).
        w1 = jax.random.normal(k1, (Cr, C), dtype=jnp.float32) * (1.0 / jnp.sqrt(C))
        w2 = jax.random.normal(k2, (C, Cr), dtype=jnp.float32) * (1.0 / jnp.sqrt(Cr))
        ref = _reference(x, w1, w2)
        out = channel_attention_3d(x, w1, w2, tile_s=tile_s)
        out = jax.block_until_ready(out)
        assert out.shape == (N, C, 1, 1, 1)
        assert jnp.allclose(out, ref, atol=1e-5, rtol=1e-5), (
            f"mismatch vs reference for case N={N} C={C} S={D*H*W} tile_s={tile_s}")

    keys = jax.random.split(master_key, 3)

    # 1) Forced small tile (S=192, TS=128): multi-tile chunked path, unmasked
    #    full tile + gated masked ragged last tile.
    run_case(2, 32, 4, 3, 8, 8, 128, keys[0])

    # 2) Auto tile (TS = S = 192, not 128-aligned): single full-extent tile path.
    run_case(2, 32, 4, 3, 8, 8, None, keys[1])

    # 3) Larger S (S=2560, TS=2048): fori-loop chunk groups (unroll=8) plus a
    #    masked last tile spanning several 128-lane chunks.
    run_case(1, 32, 4, 5, 32, 16, 2048, keys[2])

    print("KERNEL_OK")
</pallas_src>

<mosaic_0001>
module attributes {stable_mosaic.version = 11 : i64} {
  func.func @kernel(%arg0: i32, %arg1: i32, %arg2: memref<1x32x128xf32, #tpu.memory_space<vmem>>, %arg3: memref<8x32xf32, #tpu.memory_space<vmem>>, %arg4: memref<32x8xf32, #tpu.memory_space<vmem>>, %arg5: memref<1x32x1xf32, #tpu.memory_space<vmem>>, %arg6: memref<32x128xf32, #tpu.memory_space<vmem>>, %arg7: memref<32x128xf32, #tpu.memory_space<vmem>>) attributes {dimension_semantics = [#tpu.dimension_semantics<parallel>, #tpu.dimension_semantics<arbitrary>], iteration_bounds = array<i64: 2, 2>, scalar_prefetch = 0 : i64, scratch_operands = 2 : i64, tpu.core_type = #tpu.core_type<tc>, window_params = [{transform_indices = @transform_0, window_bounds = array<i64: 1, 32, 128>}, {pipeline_mode = #tpu.pipeline_mode<synchronous>, transform_indices = @transform_1, window_bounds = array<i64: 8, 32>}, {pipeline_mode = #tpu.pipeline_mode<synchronous>, transform_indices = @transform_2, window_bounds = array<i64: 32, 8>}, {transform_indices = @transform_3, window_bounds = array<i64: 1, 32, 1>}]} {
    %c0_i32 = arith.constant 0 : i32
    %0 = arith.cmpi eq, %arg1, %c0_i32 : i32
    %1 = arith.extui %0 : i1 to i32
    %c0_i32_0 = arith.constant 0 : i32
    %2 = arith.cmpi ne, %1, %c0_i32_0 : i32
    scf.if %2 {
      %cst = arith.constant 0.000000e+00 : f32
      %12 = vector.broadcast %cst : f32 to vector<32x128xf32>
      %c0 = arith.constant 0 : index
      %c0_6 = arith.constant 0 : index
      %13 = vector.load %arg6[%c0, %c0_6] : memref<32x128xf32, #tpu.memory_space<vmem>>, vector<32x128xf32>
      tpu.vector_store %arg6[%c0, %c0_6], %12 {strides = array<i32>} : memref<32x128xf32, #tpu.memory_space<vmem>>, vector<32x128xf32>,
      %cst_7 = arith.constant 0xFF800000 : f32
      %14 = vector.broadcast %cst_7 : f32 to vector<32x128xf32>
      %c0_8 = arith.constant 0 : index
      %c0_9 = arith.constant 0 : index
      %15 = vector.load %arg7[%c0_8, %c0_9] : memref<32x128xf32, #tpu.memory_space<vmem>>, vector<32x128xf32>
      tpu.vector_store %arg7[%c0_8, %c0_9], %14 {strides = array<i32>} : memref<32x128xf32, #tpu.memory_space<vmem>>, vector<32x128xf32>,
    } else {
    }
    %c1_i32 = arith.constant 1 : i32
    %3 = arith.cmpi slt, %arg1, %c1_i32 : i32
    %4 = arith.extui %3 : i1 to i32
    %c0_i32_1 = arith.constant 0 : i32
    %5 = arith.cmpi ne, %4, %c0_i32_1 : i32
    scf.if %5 {
      %c0_i32_6 = arith.constant 0 : i32
      %cst = arith.constant 0.000000e+00 : f32
      %12 = vector.broadcast %cst : f32 to vector<32x128xf32>
      %cst_7 = arith.constant 0xFF800000 : f32
      %13 = vector.broadcast %cst_7 : f32 to vector<32x128xf32>
      %c1_i32_8 = arith.constant 1 : i32
      %14 = arith.muli %c0_i32_6, %c1_i32_8 : i32
      %c0_i32_9 = arith.constant 0 : i32
      %15 = arith.addi %14, %c0_i32_9 : i32
      %c128_i32 = arith.constant 128 : i32
      %16 = arith.muli %15, %c128_i32 : i32
      %17 = tpu.assume_multiple %16, 128 : i32
      %c0 = arith.constant 0 : index
      %c0_10 = arith.constant 0 : index
      %18 = arith.index_cast %17 : i32 to index
      %19 = vector.load %arg2[%c0, %c0_10, %18] : memref<1x32x128xf32, #tpu.memory_space<vmem>>, vector<1x32x128xf32>
      %20 = vector.shape_cast %19 : vector<1x32x128xf32> to vector<32x128xf32>
      %21 = arith.addf %12, %20 : vector<32x128xf32>
      %22 = arith.maximumf %13, %20 : vector<32x128xf32>
      %c0_11 = arith.constant 0 : index
      %c0_12 = arith.constant 0 : index
      %23 = vector.load %arg6[%c0_11, %c0_12] : memref<32x128xf32, #tpu.memory_space<vmem>>, vector<32x128xf32>
      %24 = arith.addf %23, %21 : vector<32x128xf32>
      %c0_13 = arith.constant 0 : index
      %c0_14 = arith.constant 0 : index
      %25 = vector.load %arg6[%c0_13, %c0_14] : memref<32x128xf32, #tpu.memory_space<vmem>>, vector<32x128xf32>
      tpu.vector_store %arg6[%c0_13, %c0_14], %24 {strides = array<i32>} : memref<32x128xf32, #tpu.memory_space<vmem>>, vector<32x128xf32>,
      %c0_15 = arith.constant 0 : index
      %c0_16 = arith.constant 0 : index
      %26 = vector.load %arg7[%c0_15, %c0_16] : memref<32x128xf32, #tpu.memory_space<vmem>>, vector<32x128xf32>
      %27 = arith.maximumf %26, %22 : vector<32x128xf32>
      %c0_17 = arith.constant 0 : index
      %c0_18 = arith.constant 0 : index
      %28 = vector.load %arg7[%c0_17, %c0_18] : memref<32x128xf32, #tpu.memory_space<vmem>>, vector<32x128xf32>
      tpu.vector_store %arg7[%c0_17, %c0_18], %27 {strides = array<i32>} : memref<32x128xf32, #tpu.memory_space<vmem>>, vector<32x128xf32>,
      %c1_i32_19 = arith.constant 1 : i32
    } else {
    }
    %c1_i32_2 = arith.constant 1 : i32
    %6 = arith.cmpi eq, %arg1, %c1_i32_2 : i32
    %7 = arith.extui %6 : i1 to i32
    %c0_i32_3 = arith.constant 0 : i32
    %8 = arith.cmpi ne, %7, %c0_i32_3 : i32
    scf.if %8 {
      %c128_i32 = arith.constant 128 : i32
      %12 = arith.muli %arg1, %c128_i32 : i32
      %c192_i32 = arith.constant 192 : i32
      %13 = arith.subi %c192_i32, %12 : i32
      %14 = tpu.iota {dimensions = array<i32: 1>} : vector<32x128xi32>
      %c0_i32_6 = arith.constant 0 : i32
      %cst = arith.constant 0.000000e+00 : f32
      %15 = vector.broadcast %cst : f32 to vector<32x128xf32>
      %cst_7 = arith.constant 0xFF800000 : f32
      %16 = vector.broadcast %cst_7 : f32 to vector<32x128xf32>
      %c1_i32_8 = arith.constant 1 : i32
      %17 = arith.muli %c0_i32_6, %c1_i32_8 : i32
      %c0_i32_9 = arith.constant 0 : i32
      %18 = arith.addi %17, %c0_i32_9 : i32
      %c128_i32_10 = arith.constant 128 : i32
      %19 = arith.muli %18, %c128_i32_10 : i32
      %20 = tpu.assume_multiple %19, 128 : i32
      %c0 = arith.constant 0 : index
      %c0_11 = arith.constant 0 : index
      %21 = arith.index_cast %20 : i32 to index
      %22 = vector.load %arg2[%c0, %c0_11, %21] : memref<1x32x128xf32, #tpu.memory_space<vmem>>, vector<1x32x128xf32>
      %23 = vector.shape_cast %22 : vector<1x32x128xf32> to vector<32x128xf32>
      %c128_i32_12 = arith.constant 128 : i32
      %24 = arith.muli %18, %c128_i32_12 : i32
      %25 = arith.subi %13, %24 : i32
      %26 = vector.broadcast %25 : i32 to vector<32x128xi32>
      %27 = arith.cmpi slt, %14, %26 : vector<32x128xi32>
      %cst_13 = arith.constant 0.000000e+00 : f32
      %28 = vector.broadcast %cst_13 : f32 to vector<32x128xf32>
      %29 = arith.select %27, %23, %28 : vector<32x128xi1>, vector<32x128xf32>
      %cst_14 = arith.constant 0xFF800000 : f32
      %30 = vector.broadcast %cst_14 : f32 to vector<32x128xf32>
      %31 = arith.select %27, %23, %30 : vector<32x128xi1>, vector<32x128xf32>
      %32 = arith.addf %15, %29 : vector<32x128xf32>
      %33 = arith.maximumf %16, %31 : vector<32x128xf32>
      %c0_15 = arith.constant 0 : index
      %c0_16 = arith.constant 0 : index
      %34 = vector.load %arg6[%c0_15, %c0_16] : memref<32x128xf32, #tpu.memory_space<vmem>>, vector<32x128xf32>
      %35 = arith.addf %34, %32 : vector<32x128xf32>
      %c0_17 = arith.constant 0 : index
      %c0_18 = arith.constant 0 : index
      %36 = vector.load %arg6[%c0_17, %c0_18] : memref<32x128xf32, #tpu.memory_space<vmem>>, vector<32x128xf32>
      tpu.vector_store %arg6[%c0_17, %c0_18], %35 {strides = array<i32>} : memref<32x128xf32, #tpu.memory_space<vmem>>, vector<32x128xf32>,
      %c0_19 = arith.constant 0 : index
      %c0_20 = arith.constant 0 : index
      %37 = vector.load %arg7[%c0_19, %c0_20] : memref<32x128xf32, #tpu.memory_space<vmem>>, vector<32x128xf32>
      %38 = arith.maximumf %37, %33 : vector<32x128xf32>
      %c0_21 = arith.constant 0 : index
      %c0_22 = arith.constant 0 : index
      %39 = vector.load %arg7[%c0_21, %c0_22] : memref<32x128xf32, #tpu.memory_space<vmem>>, vector<32x128xf32>
      tpu.vector_store %arg7[%c0_21, %c0_22], %38 {strides = array<i32>} : memref<32x128xf32, #tpu.memory_space<vmem>>, vector<32x128xf32>,
      %c1_i32_23 = arith.constant 1 : i32
    } else {
    }
    %c1_i32_4 = arith.constant 1 : i32
    %9 = arith.cmpi eq, %arg1, %c1_i32_4 : i32
    %10 = arith.extui %9 : i1 to i32
    %c0_i32_5 = arith.constant 0 : i32
    %11 = arith.cmpi ne, %10, %c0_i32_5 : i32
    scf.if %11 {
      %c0 = arith.constant 0 : index
      %c0_6 = arith.constant 0 : index
      %12 = vector.load %arg6[%c0, %c0_6] : memref<32x128xf32, #tpu.memory_space<vmem>>, vector<32x128xf32>
      %cst = arith.constant dense<0.000000e+00> : vector<32xf32>
      %13 = vector.multi_reduction <add>, %12, %cst [1] : vector<32x128xf32> to vector<32xf32>
      %14 = vector.shape_cast %13 : vector<32xf32> to vector<32x1xf32>
      %c0_7 = arith.constant 0 : index
      %c0_8 = arith.constant 0 : index
      %15 = vector.load %arg7[%c0_7, %c0_8] : memref<32x128xf32, #tpu.memory_space<vmem>>, vector<32x128xf32>
      %cst_9 = arith.constant dense<0xFF800000> : vector<32xf32>
      %16 = vector.multi_reduction <maximumf>, %15, %cst_9 [1] : vector<32x128xf32> to vector<32xf32>
      %17 = vector.shape_cast %16 : vector<32xf32> to vector<32x1xf32>
      %cst_10 = arith.constant 0.00520833349 : f32
      %18 = vector.broadcast %cst_10 : f32 to vector<32x1xf32>
      %19 = arith.mulf %14, %18 : vector<32x1xf32>
      %20 = tpu.iota {dimensions = array<i32: 1>} : vector<32x2xi32>
      %c0_i32_11 = arith.constant 0 : i32
      %21 = vector.broadcast %c0_i32_11 : i32 to vector<32x2xi32>
      %22 = arith.cmpi eq, %20, %21 : vector<32x2xi32>
      %23 = vector.shape_cast %19 : vector<32x1xf32> to vector<32x1xf32>
      %24 = vector.broadcast %23 : vector<32x1xf32> to vector<32x2xf32>
      %25 = vector.shape_cast %17 : vector<32x1xf32> to vector<32x1xf32>
      %26 = vector.broadcast %25 : vector<32x1xf32> to vector<32x2xf32>
      %27 = arith.select %22, %24, %26 : vector<32x2xi1>, vector<32x2xf32>
      %c0_12 = arith.constant 0 : index
      %c0_13 = arith.constant 0 : index
      %28 = vector.load %arg3[%c0_12, %c0_13] : memref<8x32xf32, #tpu.memory_space<vmem>>, vector<8x32xf32>
      %c0_14 = arith.constant 0 : index
      %c0_15 = arith.constant 0 : index
      %29 = vector.load %arg4[%c0_14, %c0_15] : memref<32x8xf32, #tpu.memory_space<vmem>>, vector<32x8xf32>
      %cst_16 = arith.constant dense<0.000000e+00> : vector<8x2xf32>
      %30 = tpu.matmul %28, %27, %cst_16 {dimension_numbers = #tpu.dot_dimension_numbers<[1], [0], [0], [1], [0, 0, 1, 1], [], []>} : vector<8x32xf32>, vector<32x2xf32>, vector<8x2xf32> -> vector<8x2xf32>
      %cst_17 = arith.constant 0.000000e+00 : f32
      %31 = vector.broadcast %cst_17 : f32 to vector<8x2xf32>
      %32 = arith.maximumf %30, %31 : vector<8x2xf32>
      %cst_18 = arith.constant dense<0.000000e+00> : vector<32x2xf32>
      %33 = tpu.matmul %29, %32, %cst_18 {dimension_numbers = #tpu.dot_dimension_numbers<[1], [0], [0], [1], [0, 0, 1, 1], [], []>} : vector<32x8xf32>, vector<8x2xf32>, vector<32x2xf32> -> vector<32x2xf32>
      %cst_19 = arith.constant dense<0.000000e+00> : vector<32xf32>
      %34 = vector.multi_reduction <add>, %33, %cst_19 [1] : vector<32x2xf32> to vector<32xf32>
      %35 = vector.shape_cast %34 : vector<32xf32> to vector<32x1xf32>
      %36 = arith.negf %35 : vector<32x1xf32>
      %37 = math.exp %36 : vector<32x1xf32>
      %cst_20 = arith.constant 1.000000e+00 : f32
      %38 = vector.broadcast %cst_20 : f32 to vector<32x1xf32>
      %39 = arith.addf %38, %37 : vector<32x1xf32>
      %40 = arith.divf %38, %39 : vector<32x1xf32>
      %c0_21 = arith.constant 0 : index
      %c0_22 = arith.constant 0 : index
      %c0_23 = arith.constant 0 : index
      %41 = vector.load %arg5[%c0_21, %c0_22, %c0_23] : memref<1x32x1xf32, #tpu.memory_space<vmem>>, vector<1x32x1xf32>
      %42 = vector.shape_cast %41 : vector<1x32x1xf32> to vector<32x1xf32>
      %43 = vector.shape_cast %40 : vector<32x1xf32> to vector<1x32x1xf32>
      tpu.vector_store %arg5[%c0_21, %c0_22, %c0_23], %43 {strides = array<i32>} : memref<1x32x1xf32, #tpu.memory_space<vmem>>, vector<1x32x1xf32>,
    } else {
    }
    return
  }
  func.func @transform_0(%arg0: i32, %arg1: i32) -> (i32, i32, i32) {
    %c0_i32 = arith.constant 0 : i32
    %c0_i32_0 = arith.constant 0 : i32
    return %arg0, %c0_i32, %arg1 : i32, i32, i32
  }
  func.func @transform_1(%arg0: i32, %arg1: i32) -> (i32, i32) {
    %c0_i32 = arith.constant 0 : i32
    %c0_i32_0 = arith.constant 0 : i32
    %c0_i32_1 = arith.constant 0 : i32
    return %c0_i32, %c0_i32_0 : i32, i32
  }
  func.func @transform_2(%arg0: i32, %arg1: i32) -> (i32, i32) {
    %c0_i32 = arith.constant 0 : i32
    %c0_i32_0 = arith.constant 0 : i32
    %c0_i32_1 = arith.constant 0 : i32
    return %c0_i32, %c0_i32_0 : i32, i32
  }
  func.func @transform_3(%arg0: i32, %arg1: i32) -> (i32, i32, i32) {
    %c0_i32 = arith.constant 0 : i32
    %c0_i32_0 = arith.constant 0 : i32
    %c0_i32_1 = arith.constant 0 : i32
    return %arg0, %c0_i32, %c0_i32_0 : i32, i32, i32
  }
}

</mosaic_0001>

<llo_original>
// kernel: tpu_custom_call.1
$region0: #{tpu_custom_call.1}
  #allocation0 [shape = 'u32[]', space=smem, size = 0x4, offset = 0x4, fixed_abs, tag = 'smem constant byte address 0x4 - core index']
  #allocation1 [shape = 'u32[144,128]{1,0:T(1,128)}', space=vmem, size = 0x12000, scoped, tag = 'internal scratch']
  #allocation2 [shape = 'f32[32,128]{1,0:T(8,128)}', space=vmem, size = 0x4000, scoped, tag = 'scratch operand']
  #allocation3 [shape = 'f32[32,128]{1,0:T(8,128)}', space=vmem, size = 0x4000, scoped, tag = 'scratch operand']
  %s0 = inlined_call_operand.hbm [shape: f32[2,32,192], index: 0, kind: input, shape index: {}]
  %s1 = inlined_call_operand.vmem [shape: f32[8,32], index: 1, kind: input, shape index: {}]
  %s2 = inlined_call_operand.vmem [shape: f32[32,8], index: 2, kind: input, shape index: {}]
  %s3 = inlined_call_operand.vmem [shape: f32[2,32,1], index: 3, kind: output, shape index: {}]
  %s4 = sld [smem:[#allocation0]]
  $region61: #{tpu_custom_call.1} parent=0
    _
  %s6 = ssub.s32 1, %s4
  %s7 = scalar_select 0, %s6, %s4
  $region1: #{tpu_custom_call.1} parent=0
    #allocation4 [shape = 'u8[32768]{0}', space=vmem, size = 0x8000, scoped, tag = 'input window, operand 0']
    #allocation5 [shape = 's32[2]{0}', space=sflag, size = 0x8, scoped, tag = 'scoped memory for tpu_custom_call.1']
    %8 = vsyncpa [#allocation5], 0
    %s9 = scalar_lea.sflag [#allocation5], 1
    %10 = vsyncpa %s9, 0
    loop: start=0, step=1, limit=6
    $region2: #{tpu_custom_call.1} parent=1 // loop_pre_header
      _
    $region3: #{tpu_custom_call.1} parent=1 // loop_header
      %s12 = sphi 0, %s16
      %p13 = scmp.ge.s32.totalorder %s12, 6
      %s19 = sphi 0, %s31
      %s20 = sphi 0, %s27
      %s21 = sphi 0, %s19
      %s22 = sphi 0, %s20
      %s23 = sphi 0, %s21
      %s24 = sphi 0, %s22
      %s36 = sphi 0, %s38
      %s39 = sphi 0, %s36
      %s40 = sphi 0, %s39
      %s56 = sphi 0, %s40
      %s60 = sphi 0, %s60
      %s62 = sphi 0, %s60
      %s63 = sphi 0, %s62
      %s77 = sphi 0, %s63
      %s81 = sphi 0, %s81
      %s83 = sphi 0, %s81
      %s84 = sphi 0, %s83
      %s98 = sphi 0, %s84
      %s104 = sphi 0, %s106
      %s107 = sphi 0, %s104
      %s108 = sphi 0, %s107
      %s124 = sphi 0, %s108
    $region4: #{tpu_custom_call.1} parent=1 // loop_header_branch
      %15 = sbr.rel (%p13) target = $region8
    $region5: #{tpu_custom_call.1} parent=1 // loop_body
      %s17 = ssub.s32 %s12, 1
      %s18 = ssub.s32 %s12, 2
      %s25 = sadd.s32 1, %s20
      %p26 = scmp.ge.s32.totalorder %s25, 2
      %s27 = scalar_select %p26, 0, %s25
      %s28 = sadd.s32 1, %s19
      %s29 = scalar_select %p26, %s28, %s19
      %p30 = scmp.ge.s32.totalorder %s29, 2
      %s31 = scalar_select %p30, 0, %s29
      %s32 = ssub.s32 %s19, %s31
      %s33 = ssub.s32 %s20, %s27
      %s34 = sor.u32 %s32, %s33
      %p35 = scmp.eq.s32.totalorder %s34, 0
      %s37 = sadd.s32 %s36, 1
      %s38 = scalar_select %p35, %s36, %s37
      %p41 = pneg %p35
      %p42 = scmp.eq.s32.totalorder %s12, 3
      %p43 = por %p41, %p42
      %p44 = scmp.ne.s32.totalorder %s36, %s39
      %p45 = scmp.eq.s32.totalorder %s12, 0
      %p46 = por %p44, %p45
      %p47 = scmp.ne.s32.totalorder %s36, %s39
      %p48 = scmp.eq.s32.totalorder %s17, 3
      %p49 = por %p47, %p48
      %p50 = scmp.ne.s32.totalorder %s39, %s40
      %p51 = scmp.eq.s32.totalorder %s17, 0
      %p52 = por %p50, %p51
      %p53 = scmp.ne.s32.totalorder %s39, %s40
      %p54 = scmp.eq.s32.totalorder %s18, 3
      %p55 = por %p53, %p54
      %p57 = scmp.ne.s32.totalorder %s40, %s56
      %p58 = scmp.eq.s32.totalorder %s18, 0
      %p59 = por %p57, %p58
      %s61 = sadd.s32 %s60, 1
      %p64 = scmp.eq.s32.totalorder %s12, 3
      %p65 = scmp.ne.s32.totalorder %s60, %s62
      %p66 = scmp.eq.s32.totalorder %s12, 0
      %p67 = por %p65, %p66
      %p68 = scmp.ne.s32.totalorder %s60, %s62
      %p69 = scmp.eq.s32.totalorder %s17, 3
      %p70 = por %p68, %p69
      %p71 = scmp.ne.s32.totalorder %s62, %s63
      %p72 = scmp.eq.s32.totalorder %s17, 0
      %p73 = por %p71, %p72
      %p74 = scmp.ne.s32.totalorder %s62, %s63
      %p75 = scmp.eq.s32.totalorder %s18, 3
      %p76 = por %p74, %p75
      %p78 = scmp.ne.s32.totalorder %s63, %s77
      %p79 = scmp.eq.s32.totalorder %s18, 0
      %p80 = por %p78, %p79
      %s82 = sadd.s32 %s81, 1
      %p85 = scmp.eq.s32.totalorder %s12, 3
      %p86 = scmp.ne.s32.totalorder %s81, %s83
      %p87 = scmp.eq.s32.totalorder %s12, 0
      %p88 = por %p86, %p87
      %p89 = scmp.ne.s32.totalorder %s81, %s83
      %p90 = scmp.eq.s32.totalorder %s17, 3
      %p91 = por %p89, %p90
      %p92 = scmp.ne.s32.totalorder %s83, %s84
      %p93 = scmp.eq.s32.totalorder %s17, 0
      %p94 = por %p92, %p93
      %p95 = scmp.ne.s32.totalorder %s83, %s84
      %p96 = scmp.eq.s32.totalorder %s18, 3
      %p97 = por %p95, %p96
      %p99 = scmp.ne.s32.totalorder %s84, %s98
      %p100 = scmp.eq.s32.totalorder %s18, 0
      %p101 = por %p99, %p100
      %s102 = ssub.s32 %s19, %s31
      %p103 = scmp.eq.s32.totalorder %s102, 0
      %s105 = sadd.s32 %s104, 1
      %s106 = scalar_select %p103, %s104, %s105
      %p109 = pneg %p103
      %p110 = scmp.eq.s32.totalorder %s12, 3
      %p111 = por %p109, %p110
      %p112 = scmp.ne.s32.totalorder %s104, %s107
      %p113 = scmp.eq.s32.totalorder %s12, 0
      %p114 = por %p112, %p113
      %p115 = scmp.ne.s32.totalorder %s104, %s107
      %p116 = scmp.eq.s32.totalorder %s17, 3
      %p117 = por %p115, %p116
      %p118 = scmp.ne.s32.totalorder %s107, %s108
      %p119 = scmp.eq.s32.totalorder %s17, 0
      %p120 = por %p118, %p119
      %p121 = scmp.ne.s32.totalorder %s107, %s108
      %p122 = scmp.eq.s32.totalorder %s18, 3
      %p123 = por %p121, %p122
      %p125 = scmp.ne.s32.totalorder %s108, %s124
      %p126 = scmp.eq.s32.totalorder %s18, 0
      %p127 = por %p125, %p126
      %p128 = scmp.le.s32.totalorder 1, %s12
      %p129 = scmp.lt.s32.totalorder %s12, 5
      %p130 = pnand %p128, %p129
      %p131 = pneg %p130
      // Predicated region
      $region9: #{tpu_custom_call.1} parent=5 // pred_check
        _
      $region10: #{tpu_custom_call.1} parent=5 // pred_check_branch
        %133 = sbr.rel (%p130) target = $region12
      $region11: #{tpu_custom_call.1} parent=5 // pred_region
        %s134 = ssub.s32 %s12, 1
        // Predicated region
        $region13: #{tpu_custom_call.1} parent=11 // pred_check
          %p135 = pneg %p73
        $region14: #{tpu_custom_call.1} parent=11 // pred_check_branch
          %137 = sbr.rel (%p135) target = $region16
        $region15: #{tpu_custom_call.1} parent=11 // pred_region
          _
        $region16: #{tpu_custom_call.1} parent=11 // pred_fallthru
          _
        // Predicated region
        $region17: #{tpu_custom_call.1} parent=11 // pred_check
          %p138 = pneg %p94
        $region18: #{tpu_custom_call.1} parent=11 // pred_check_branch
          %140 = sbr.rel (%p138) target = $region20
        $region19: #{tpu_custom_call.1} parent=11 // pred_region
          _
        $region20: #{tpu_custom_call.1} parent=11 // pred_fallthru
          _
      $region12: #{tpu_custom_call.1} parent=5 // pred_fallthru
        _
      %p141 = scmp.lt.s32.totalorder %s12, 4
      // Predicated region
      $region21: #{tpu_custom_call.1} parent=5 // pred_check
        %p142 = pneg %p141
      $region22: #{tpu_custom_call.1} parent=5 // pred_check_branch
        %144 = sbr.rel (%p142) target = $region24
      $region23: #{tpu_custom_call.1} parent=5 // pred_region
        // Predicated region
        $region25: #{tpu_custom_call.1} parent=23 // pred_check
          %p145 = pneg %p46
        $region26: #{tpu_custom_call.1} parent=23 // pred_check_branch
          %147 = sbr.rel (%p145) target = $region28
        $region27: #{tpu_custom_call.1} parent=23 // pred_region
          %s148 = sand.u32 %s36, 1
          %s149 = scalar_lea.sflag [#allocation5], %s148
          %s150 = sand.u32 %s36, 1
          %s151 = smul.addr %s150, 32
          %s152 = scalar_lea.vmem [#allocation4], %s151
          %s154 = ssub.s32 512, 512
          %155 = vsyncadd %s149, %s154
          %s156 = smul.addr %s19, 8
          %s157 = sadd.s32 %s20, %s156
          %s158 = smul.addr %s157, 128
          %s159 = scalar_lea.hbm %s0, %s158
          %s160 = sshll.u32 %s152, 4
          %s161 = int_to_ptr.vmem [resolvable:$true] %s160
          %166 = dma.hbm_to_vmem [thread:$0]  %s159, 512, %s161, %s149, 256, 128, 8
        $region28: #{tpu_custom_call.1} parent=23 // pred_fallthru
          _
      $region24: #{tpu_custom_call.1} parent=5 // pred_fallthru
        _
      %p167 = scmp.le.s32.totalorder 1, %s12
      %p168 = scmp.lt.s32.totalorder %s12, 5
      %p169 = pnand %p167, %p168
      %p170 = pneg %p169
      // Predicated region
      $region29: #{tpu_custom_call.1} parent=5 // pred_check
        _
      $region30: #{tpu_custom_call.1} parent=5 // pred_check_branch
        %172 = sbr.rel (%p169) target = $region32
      $region31: #{tpu_custom_call.1} parent=5 // pred_region
        %s173 = ssub.s32 %s12, 1
        %s174 = sand.u32 %s39, 1
        %s175 = scalar_lea.sflag [#allocation5], %s174
        %s176 = sand.u32 %s39, 1
        %s177 = smul.addr %s176, 32
        %s178 = scalar_lea.vmem [#allocation4], %s177
        // Predicated region
        $region33: #{tpu_custom_call.1} parent=31 // pred_check
          %p179 = pneg %p52
        $region34: #{tpu_custom_call.1} parent=31 // pred_check_branch
          %181 = sbr.rel (%p179) target = $region36
        $region35: #{tpu_custom_call.1} parent=31 // pred_region
          %182 = dma.done %s175, 512
        $region36: #{tpu_custom_call.1} parent=31 // pred_fallthru
          _
        %s183 = sand.u32 %s39, 1
        %s184 = scalar_lea.sflag [#allocation5], %s183
        %s185 = sand.u32 %s39, 1
        %s186 = smul.addr %s185, 32
        %s187 = scalar_lea.vmem [#allocation4], %s186
        %p188 = pneg %p52
        %p189 = pneg %p49
        %p190 = pneg %p73
        %p191 = pneg %p70
        %p192 = pneg %p94
        %p193 = pneg %p91
        %p194 = pneg %p120
        %p195 = pneg %p117
        %p196 = scmp.lt.s32.totalorder %s21, 1
        %s197 = scalar_select %p196, %s21, 1
        %s198 = smul.addr %s197, 4
        %s199 = smul.addr %s198, 8
        %s200 = scalar_lea.vmem %s3, %s199
        %p201 = scmp.lt.s32.totalorder %s21, 1
        %s202 = scalar_select %p201, %s21, 1
        %s203 = smul.addr %s202, 4
        %s204 = smul.addr %s203, 8
        %s205 = scalar_lea.vmem %s3, %s204
        %p206 = scmp.eq.s32.totalorder %s22, 0
        // Predicated region
        $region37: #{tpu_custom_call.1} parent=31 // pred_check
          %p207 = pneg %p206
        $region38: #{tpu_custom_call.1} parent=31 // pred_check_branch
          %209 = sbr.rel (%p207) target = $region40
        $region39: #{tpu_custom_call.1} parent=31 // pred_region
          %210 = vst [vmem:[#allocation2] sm:$0xff] 0.0
          %211 = vst [vmem:[#allocation2 + $0x8] sm:$0xff] 0.0
          %212 = vst [vmem:[#allocation2 + $0x10] sm:$0xff] 0.0
          %213 = vst [vmem:[#allocation2 + $0x18] sm:$0xff] 0.0
          %214 = vst [vmem:[#allocation3] sm:$0xff] -inf
          %215 = vst [vmem:[#allocation3 + $0x8] sm:$0xff] -inf
          %216 = vst [vmem:[#allocation3 + $0x10] sm:$0xff] -inf
          %217 = vst [vmem:[#allocation3 + $0x18] sm:$0xff] -inf
        $region40: #{tpu_custom_call.1} parent=31 // pred_fallthru
          _
        %p218 = scmp.lt.s32.totalorder %s22, 1
        // Predicated region
        $region41: #{tpu_custom_call.1} parent=31 // pred_check
          %p219 = pneg %p218
        $region42: #{tpu_custom_call.1} parent=31 // pred_check_branch
          %221 = sbr.rel (%p219) target = $region44
        $region43: #{tpu_custom_call.1} parent=31 // pred_region
          %v222 = vld [vmem:[%s178] sm:$0xff]
          %v223 = vld [vmem:[%s178 + $0x8] sm:$0xff]
          %v224 = vld [vmem:[%s178 + $0x10] sm:$0xff]
          %v225 = vld [vmem:[%s178 + $0x18] sm:$0xff]
          %v226 = vadd.f32 %v222, 0.0
          %v227 = vadd.f32 %v223, 0.0
          %v228 = vadd.f32 %v224, 0.0
          %v229 = vadd.f32 %v225, 0.0
          %v230 = vld [vmem:[#allocation2] sm:$0xff]
          %v231 = vld [vmem:[#allocation2 + $0x8] sm:$0xff]
          %v232 = vld [vmem:[#allocation2 + $0x10] sm:$0xff]
          %v233 = vld [vmem:[#allocation2 + $0x18] sm:$0xff]
          %v234 = vadd.f32 %v230, %v226
          %v235 = vadd.f32 %v231, %v227
          %v236 = vadd.f32 %v232, %v228
          %v237 = vadd.f32 %v233, %v229
          %238 = vst [vmem:[#allocation2] sm:$0xff] %v234
          %239 = vst [vmem:[#allocation2 + $0x8] sm:$0xff] %v235
          %240 = vst [vmem:[#allocation2 + $0x10] sm:$0xff] %v236
          %241 = vst [vmem:[#allocation2 + $0x18] sm:$0xff] %v237
          %v242 = vld [vmem:[#allocation3] sm:$0xff]
          %v243 = vld [vmem:[#allocation3 + $0x8] sm:$0xff]
          %v244 = vld [vmem:[#allocation3 + $0x10] sm:$0xff]
          %v245 = vld [vmem:[#allocation3 + $0x18] sm:$0xff]
          %v246 = vmax.f32 %v242, %v222
          %v247 = vmax.f32 %v243, %v223
          %v248 = vmax.f32 %v244, %v224
          %v249 = vmax.f32 %v245, %v225
          %250 = vst [vmem:[#allocation3] sm:$0xff] %v246
          %251 = vst [vmem:[#allocation3 + $0x8] sm:$0xff] %v247
          %252 = vst [vmem:[#allocation3 + $0x10] sm:$0xff] %v248
          %253 = vst [vmem:[#allocation3 + $0x18] sm:$0xff] %v249
        $region44: #{tpu_custom_call.1} parent=31 // pred_fallthru
          _
        %p254 = scmp.eq.s32.totalorder %s22, 1
        // Predicated region
        $region45: #{tpu_custom_call.1} parent=31 // pred_check
          %p255 = pneg %p254
        $region46: #{tpu_custom_call.1} parent=31 // pred_check_branch
          %257 = sbr.rel (%p255) target = $region48
        $region47: #{tpu_custom_call.1} parent=31 // pred_region
          %s258 = smul.u32 %s22, 128
          %s259 = ssub.s32 192, %s258
          %v260 = vlaneseq
          %v261 = vand.u32 %v260, 127
          %v262 = vld [vmem:[%s178] sm:$0xff]
          %v263 = vld [vmem:[%s178 + $0x8] sm:$0xff]
          %v264 = vld [vmem:[%s178 + $0x10] sm:$0xff]
          %v265 = vld [vmem:[%s178 + $0x18] sm:$0xff]
          %v266 = vstv %s259
          %vm267 = vcmp.lt.s32.totalorder %v261, %v266
          %v268 = vsel %vm267, %v262, 0.0
          %v269 = vsel %vm267, %v263, 0.0
          %v270 = vsel %vm267, %v264, 0.0
          %v271 = vsel %vm267, %v265, 0.0
          %v272 = vsel %vm267, %v262, -inf
          %v273 = vsel %vm267, %v263, -inf
          %v274 = vsel %vm267, %v264, -inf
          %v275 = vsel %vm267, %v265, -inf
          %v276 = vadd.f32 %v268, 0.0
          %v277 = vadd.f32 %v269, 0.0
          %v278 = vadd.f32 %v270, 0.0
          %v279 = vadd.f32 %v271, 0.0
          %v280 = vld [vmem:[#allocation2] sm:$0xff]
          %v281 = vld [vmem:[#allocation2 + $0x8] sm:$0xff]
          %v282 = vld [vmem:[#allocation2 + $0x10] sm:$0xff]
          %v283 = vld [vmem:[#allocation2 + $0x18] sm:$0xff]
          %v284 = vadd.f32 %v280, %v276
          %v285 = vadd.f32 %v281, %v277
          %v286 = vadd.f32 %v282, %v278
          %v287 = vadd.f32 %v283, %v279
          %288 = vst [vmem:[#allocation2] sm:$0xff] %v284
          %289 = vst [vmem:[#allocation2 + $0x8] sm:$0xff] %v285
          %290 = vst [vmem:[#allocation2 + $0x10] sm:$0xff] %v286
          %291 = vst [vmem:[#allocation2 + $0x18] sm:$0xff] %v287
          %v292 = vld [vmem:[#allocation3] sm:$0xff]
          %v293 = vld [vmem:[#allocation3 + $0x8] sm:$0xff]
          %v294 = vld [vmem:[#allocation3 + $0x10] sm:$0xff]
          %v295 = vld [vmem:[#allocation3 + $0x18] sm:$0xff]
          %v296 = vmax.f32 %v292, %v272
          %v297 = vmax.f32 %v293, %v273
          %v298 = vmax.f32 %v294, %v274
          %v299 = vmax.f32 %v295, %v275
          %300 = vst [vmem:[#allocation3] sm:$0xff] %v296
          %301 = vst [vmem:[#allocation3 + $0x8] sm:$0xff] %v297
          %302 = vst [vmem:[#allocation3 + $0x10] sm:$0xff] %v298
          %303 = vst [vmem:[#allocation3 + $0x18] sm:$0xff] %v299
          %v304 = vld [vmem:[#allocation2] sm:$0xff]
          %v305 = vld [vmem:[#allocation2 + $0x8] sm:$0xff]
          %v306 = vld [vmem:[#allocation2 + $0x10] sm:$0xff]
          %v307 = vld [vmem:[#allocation2 + $0x18] sm:$0xff]
          %308 = vadd.xlane.f32.xlu0 %v304
          %v309 = vpop.xlane.xlu0 %308
          %310 = vadd.xlane.f32.xlu0 %v305
          %v311 = vpop.xlane.xlu0 %310
          %312 = vadd.xlane.f32.xlu0 %v306
          %v313 = vpop.xlane.xlu0 %312
          %314 = vadd.xlane.f32.xlu0 %v307
          %v315 = vpop.xlane.xlu0 %314
          %v316 = vld [vmem:[#allocation3] sm:$0xff]
          %v317 = vld [vmem:[#allocation3 + $0x8] sm:$0xff]
          %v318 = vld [vmem:[#allocation3 + $0x10] sm:$0xff]
          %v319 = vld [vmem:[#allocation3 + $0x18] sm:$0xff]
          %320 = vmax.xlane.f32.xlu0 %v316
          %v321 = vpop.xlane.xlu0 %320
          %322 = vmax.xlane.f32.xlu0 %v317
          %v323 = vpop.xlane.xlu0 %322
          %324 = vmax.xlane.f32.xlu0 %v318
          %v325 = vpop.xlane.xlu0 %324
          %326 = vmax.xlane.f32.xlu0 %v319
          %v327 = vpop.xlane.xlu0 %326
          %v328 = vmul.f32 %v309, 0.0052083335
          %v329 = vmul.f32 %v311, 0.0052083335
          %v330 = vmul.f32 %v313, 0.0052083335
          %v331 = vmul.f32 %v315, 0.0052083335
          %vm332 = vcmp.eq.s32.totalorder %v261, 0
          %v333 = vsel %vm332, %v328, %v321
          %v334 = vsel %vm332, %v329, %v323
          %v335 = vsel %vm332, %v330, %v325
          %v336 = vsel %vm332, %v331, %v327
          %v337 = vld [vmem:[%s1] sm:$0xff]
          %v338 = vld [vmem:[%s2] sm:$0xff]
          %v339 = vld [vmem:[%s2 + $0x8] sm:$0xff]
          %v340 = vld [vmem:[%s2 + $0x10] sm:$0xff]
          %v341 = vld [vmem:[%s2 + $0x18] sm:$0xff]
          %vm342 = vcmask 261120
          %v344 = vsel %vm342, %v337, 0
          %346 = vmatprep.subr.mxu0 0.0
          %347 = vmatpush1.msra.mxu0 %v333
          %348 = vmatprep.subr.mxu0 0.0
          %349 = vmatpush1.msra.mxu0 %v334
          %350 = vmatprep.subr.mxu0 0.0
          %351 = vmatpush1.msra.mxu0 %v335
          %352 = vmatprep.subr.mxu0 0.0
          %353 = vmatpush1.msra.mxu0 %v336
          %354 = vmatprep.subr.mxu0 0.0
          %355 = vmatpush1.msra.mxu0 0.0
          %356 = vmatprep.subr.mxu0 0.0
          %357 = vmatpush1.msra.mxu0 0.0
          %358 = vmatprep.subr.mxu0 0.0
          %359 = vmatpush1.msra.mxu0 0.0
          %360 = vmatprep.subr.mxu0 0.0
          %361 = vmatpush1.msra.mxu0 0.0
          %362 = vmatprep.subr.mxu0 0.0
          %363 = vmatpush1.msra.mxu0 0.0
          %364 = vmatprep.subr.mxu0 0.0
          %365 = vmatpush1.msra.mxu0 0.0
          %366 = vmatprep.subr.mxu0 0.0
          %367 = vmatpush1.msra.mxu0 0.0
          %368 = vmatprep.subr.mxu0 0.0
          %369 = vmatpush1.msra.mxu0 0.0
          %370 = vmatprep.subr.mxu0 0.0
          %371 = vmatpush1.msra.mxu0 0.0
          %372 = vmatprep.subr.mxu0 0.0
          %373 = vmatpush1.msra.mxu0 0.0
          %374 = vmatprep.subr.mxu0 0.0
          %375 = vmatpush1.msra.mxu0 0.0
          %376 = vmatprep.subr.mxu0 0.0
          %377 = vmatpush1.msra.mxu0 0.0
          %378 = vmatprep.subr.mxu0 0.0
          %379 = vmatpush1.msra.mxu0 0.0
          %380 = vmatprep.subr.mxu0 0.0
          %381 = vmatpush1.msra.mxu0 0.0
          %382 = vmatprep.subr.mxu0 0.0
          %383 = vmatpush1.msra.mxu0 0.0
          %384 = vmatprep.subr.mxu0 0.0
          %385 = vmatpush1.msra.mxu0 0.0
          %386 = vmatprep.subr.mxu0 0.0
          %387 = vmatpush1.msra.mxu0 0.0
          %388 = vmatprep.subr.mxu0 0.0
          %389 = vmatpush1.msra.mxu0 0.0
          %390 = vmatprep.subr.mxu0 0.0
          %391 = vmatpush1.msra.mxu0 0.0
          %392 = vmatprep.subr.mxu0 0.0
          %393 = vmatpush1.msra.mxu0 0.0
          %394 = vmatprep.subr.mxu0 0.0
          %395 = vmatpush1.msra.mxu0 0.0
          %396 = vmatprep.subr.mxu0 0.0
          %397 = vmatpush1.msra.mxu0 0.0
          %398 = vmatprep.subr.mxu0 0.0
          %399 = vmatpush1.msra.mxu0 0.0
          %400 = vmatprep.subr.mxu0 0.0
          %401 = vmatpush1.msra.mxu0 0.0
          %402 = vmatprep.subr.mxu0 0.0
          %403 = vmatpush1.msra.mxu0 0.0
          %404 = vmatprep.subr.mxu0 0.0
          %405 = vmatpush1.msra.mxu0 0.0
          %406 = vmatprep.subr.mxu0 0.0
          %407 = vmatpush1.msra.mxu0 0.0
          %408 = vmatprep.subr.mxu0 0.0
          %409 = vmatpush1.msra.mxu0 0.0
          %410 = vmatprep.mubr.f32.mxu0 0.0
          %411 = vmatmul.mubr.f32.gmra.mrb[0].mxu0 %v344
          %v412 = vpop.f32.mrb[0].mxu0
          %v413 = vadd.f32 0.0, %v412
          %v414 = vpop.f32.mrb[0].mxu0
          %415 = vdwg.mxu0
          %v416 = vmax.f32 %v413, 0.0
          %vm417 = vcmask 64512
          %v419 = vsel %vm417, %v338, 0
          %v422 = vsel %vm417, %v339, 0
          %v425 = vsel %vm417, %v340, 0
          %v428 = vsel %vm417, %v341, 0
          %430 = vmatprep.subr.mxu0 0.0
          %431 = vmatpush1.msra.mxu0 %v416
          %432 = vmatprep.subr.mxu0 0.0
          %433 = vmatpush1.msra.mxu0 0.0
          %434 = vmatprep.subr.mxu0 0.0
          %435 = vmatpush1.msra.mxu0 0.0
          %436 = vmatprep.subr.mxu0 0.0
          %437 = vmatpush1.msra.mxu0 0.0
          %438 = vmatprep.subr.mxu0 0.0
          %439 = vmatpush1.msra.mxu0 0.0
          %440 = vmatprep.subr.mxu0 0.0
          %441 = vmatpush1.msra.mxu0 0.0
          %442 = vmatprep.subr.mxu0 0.0
          %443 = vmatpush1.msra.mxu0 0.0
          %444 = vmatprep.subr.mxu0 0.0
          %445 = vmatpush1.msra.mxu0 0.0
          %446 = vmatprep.subr.mxu0 0.0
          %447 = vmatpush1.msra.mxu0 0.0
          %448 = vmatprep.subr.mxu0 0.0
          %449 = vmatpush1.msra.mxu0 0.0
          %450 = vmatprep.subr.mxu0 0.0
          %451 = vmatpush1.msra.mxu0 0.0
          %452 = vmatprep.subr.mxu0 0.0
          %453 = vmatpush1.msra.mxu0 0.0
          %454 = vmatprep.subr.mxu0 0.0
          %455 = vmatpush1.msra.mxu0 0.0
          %456 = vmatprep.subr.mxu0 0.0
          %457 = vmatpush1.msra.mxu0 0.0
          %458 = vmatprep.subr.mxu0 0.0
          %459 = vmatpush1.msra.mxu0 0.0
          %460 = vmatprep.subr.mxu0 0.0
          %461 = vmatpush1.msra.mxu0 0.0
          %462 = vmatprep.subr.mxu0 0.0
          %463 = vmatpush1.msra.mxu0 0.0
          %464 = vmatprep.subr.mxu0 0.0
          %465 = vmatpush1.msra.mxu0 0.0
          %466 = vmatprep.subr.mxu0 0.0
          %467 = vmatpush1.msra.mxu0 0.0
          %468 = vmatprep.subr.mxu0 0.0
          %469 = vmatpush1.msra.mxu0 0.0
          %470 = vmatprep.subr.mxu0 0.0
          %471 = vmatpush1.msra.mxu0 0.0
          %472 = vmatprep.subr.mxu0 0.0
          %473 = vmatpush1.msra.mxu0 0.0
          %474 = vmatprep.subr.mxu0 0.0
          %475 = vmatpush1.msra.mxu0 0.0
          %476 = vmatprep.subr.mxu0 0.0
          %477 = vmatpush1.msra.mxu0 0.0
          %478 = vmatprep.subr.mxu0 0.0
          %479 = vmatpush1.msra.mxu0 0.0
          %480 = vmatprep.subr.mxu0 0.0
          %481 = vmatpush1.msra.mxu0 0.0
          %482 = vmatprep.subr.mxu0 0.0
          %483 = vmatpush1.msra.mxu0 0.0
          %484 = vmatprep.subr.mxu0 0.0
          %485 = vmatpush1.msra.mxu0 0.0
          %486 = vmatprep.subr.mxu0 0.0
          %487 = vmatpush1.msra.mxu0 0.0
          %488 = vmatprep.subr.mxu0 0.0
          %489 = vmatpush1.msra.mxu0 0.0
          %490 = vmatprep.subr.mxu0 0.0
          %491 = vmatpush1.msra.mxu0 0.0
          %492 = vmatprep.subr.mxu0 0.0
          %493 = vmatpush1.msra.mxu0 0.0
          %494 = vmatprep.mubr.f32.mxu0 0.0
          %495 = vmatmul.mubr.f32.gmra.mrb[0].mxu0 %v419
          %v496 = vpop.f32.mrb[0].mxu0
          %v497 = vadd.f32 0.0, %v496
          %v498 = vpop.f32.mrb[0].mxu0
          %499 = vmatprep.mubr.f32.mxu0 0.0
          %500 = vmatmul.mubr.f32.gmra.mrb[0].mxu0 %v422
          %v501 = vpop.f32.mrb[0].mxu0
          %v502 = vadd.f32 0.0, %v501
          %v503 = vpop.f32.mrb[0].mxu0
          %504 = vmatprep.mubr.f32.mxu0 0.0
          %505 = vmatmul.mubr.f32.gmra.mrb[0].mxu0 %v425
          %v506 = vpop.f32.mrb[0].mxu0
          %v507 = vadd.f32 0.0, %v506
          %v508 = vpop.f32.mrb[0].mxu0
          %509 = vmatprep.mubr.f32.mxu0 0.0
          %510 = vmatmul.mubr.f32.gmra.mrb[0].mxu0 %v428
          %v511 = vpop.f32.mrb[0].mxu0
          %v512 = vadd.f32 0.0, %v511
          %v513 = vpop.f32.mrb[0].mxu0
          %514 = vdwg.mxu0
          %vm515 = vcmask 15360
          %v516 = vsel %vm515, %v497, 0.0
          %517 = vadd.xlane.f32.xlu0 %v516
          %v518 = vpop.xlane.xlu0 %517
          %v519 = vsel %vm515, %v502, 0.0
          %520 = vadd.xlane.f32.xlu0 %v519
          %v521 = vpop.xlane.xlu0 %520
          %v522 = vsel %vm515, %v507, 0.0
          %523 = vadd.xlane.f32.xlu0 %v522
          %v524 = vpop.xlane.xlu0 %523
          %v525 = vsel %vm515, %v512, 0.0
          %526 = vadd.xlane.f32.xlu0 %v525
          %v527 = vpop.xlane.xlu0 %526
          %v528 = vxor.u32 %v518, 2147483648
          %v529 = vxor.u32 %v521, 2147483648
          %v530 = vxor.u32 %v524, 2147483648
          %v531 = vxor.u32 %v527, 2147483648
          %v532 = vmul.f32 %v528, 1.442695
          %v533 = vpow.pop %v532
          %v534 = vmul.f32 %v529, 1.442695
          %v535 = vpow.pop %v534
          %v536 = vmul.f32 %v530, 1.442695
          %v537 = vpow.pop %v536
          %v538 = vmul.f32 %v531, 1.442695
          %v539 = vpow.pop %v538
          %v540 = vadd.f32 %v533, 1.0
          %v541 = vadd.f32 %v535, 1.0
          %v542 = vadd.f32 %v537, 1.0
          %v543 = vadd.f32 %v539, 1.0
          %v544 = vrcp.pop %v540
          %v545 = vmul.f32 1.0, %v544
          %v546 = vrcp.pop %v541
          %v547 = vmul.f32 1.0, %v546
          %v548 = vrcp.pop %v542
          %v549 = vmul.f32 1.0, %v548
          %v550 = vrcp.pop %v543
          %v551 = vmul.f32 1.0, %v550
          %vm552 = vcmask 7168
          %553 = vst.msk [vmem:[%s205] sm:$0xff] %vm552, %v545
          %554 = vst.msk [vmem:[%s205 + $0x8] sm:$0xff] %vm552, %v547
          %555 = vst.msk [vmem:[%s205 + $0x10] sm:$0xff] %vm552, %v549
          %556 = vst.msk [vmem:[%s205 + $0x18] sm:$0xff] %vm552, %v551
        $region48: #{tpu_custom_call.1} parent=31 // pred_fallthru
          _
        %p557 = scmp.lt.s32.totalorder %s21, 1
        %s558 = scalar_select %p557, %s21, 1
        %s559 = smul.addr %s558, 4
        %s560 = smul.addr %s559, 8
        %s561 = scalar_lea.vmem %s3, %s560
        // Predicated region
        $region49: #{tpu_custom_call.1} parent=31 // pred_check
          %p562 = pneg %p117
        $region50: #{tpu_custom_call.1} parent=31 // pred_check_branch
          %564 = sbr.rel (%p562) target = $region52
        $region51: #{tpu_custom_call.1} parent=31 // pred_region
          _
        $region52: #{tpu_custom_call.1} parent=31 // pred_fallthru
          _
      $region32: #{tpu_custom_call.1} parent=5 // pred_fallthru
        _
      %p565 = scmp.le.s32.totalorder 2, %s12
      // Predicated region
      $region53: #{tpu_custom_call.1} parent=5 // pred_check
        %p566 = pneg %p565
      $region54: #{tpu_custom_call.1} parent=5 // pred_check_branch
        %568 = sbr.rel (%p566) target = $region56
      $region55: #{tpu_custom_call.1} parent=5 // pred_region
        %s569 = ssub.s32 %s12, 2
        // Predicated region
        $region57: #{tpu_custom_call.1} parent=55 // pred_check
          %p570 = pneg %p123
        $region58: #{tpu_custom_call.1} parent=55 // pred_check_branch
          %572 = sbr.rel (%p570) target = $region60
        $region59: #{tpu_custom_call.1} parent=55 // pred_region
          %p573 = scmp.lt.s32.totalorder %s23, 1
          %s574 = scalar_select %p573, %s23, 1
          %s575 = smul.addr %s574, 4
          %s576 = smul.addr %s575, 8
          %s577 = scalar_lea.vmem %s3, %s576
        $region60: #{tpu_custom_call.1} parent=55 // pred_fallthru
          _
      $region56: #{tpu_custom_call.1} parent=5 // pred_fallthru
        _
    $region6: #{tpu_custom_call.1} parent=1 // loop_footer
      %s16 = sadd.s32 1, %s12
    $region7: #{tpu_custom_call.1} parent=1 // loop_footer_branch
      %11 = sbr.rel target = $region3
    $region8: #{tpu_custom_call.1} parent=1 // loop_exit
      _
    %578 = vsyncpa [#allocation5], 1
    %s579 = scalar_lea.sflag [#allocation5], 1
    %580 = vsyncpa %s579, 1

</llo_original>
